<compile_context>
chip_gen: v7x
topology: tpu7x:2x2x1
jax: 0.10.0
libtpu: 0.0.40
codegen_flags: <defaults>
</compile_context>

<pallas_src>
import functools
import itertools

import jax
import jax.numpy as jnp
import numpy as np
from jax import lax
from jax.experimental import pallas as pl
from jax.experimental.pallas import tpu as pltpu

try:  # host-side Hungarian: prefer the C implementation
    from scipy.optimize import linear_sum_assignment as _scipy_lsa
except Exception:  # pragma: no cover
    _scipy_lsa = None


def _round_up(x, m):
    return ((x + m - 1) // m) * m


@functools.lru_cache(maxsize=1)
def _tensorcores_per_chip():
    """2 for megacore-style chips (v7x / v4 / v5p), else 1 (v5e / v6e)."""
    try:
        kind = jax.devices()[0].device_kind.lower()
    except Exception:
        return 1
    return 2 if any(tag in kind for tag in ("v7", "v4", "v5p")) else 1


# ----------------------------------------------------------------------------
# Pallas kernel: one (tile_q, T_pad) tile of the matching cost.
# ----------------------------------------------------------------------------
def _matcher_cost_kernel(logits_t_ref, pts_ref, tgt_t_ref, c_ref, *,
                         class_weight, coord_weight, alpha, gamma, n_pts):
    f32 = jnp.float32
    with_l1 = (coord_weight != 0.0)

    # ---- focal classification cost (lane-dense) ----------------------------
    # Logits arrive transposed (P, tile_q): queries on the 128 lanes, so every
    # VALU/EUP op runs at full lane occupancy (was 8-16/128 lanes before).
    x = logits_t_ref[...].astype(f32)                         # (P, tq)
    e = jnp.exp(-jnp.abs(x))                                  # one exp, reused
    sp_x = jnp.maximum(x, 0.0) + jnp.log1p(e)                 # softplus(x)  = -log(1-sigmoid)
    sp_nx = sp_x - x                                          # softplus(-x) = -log(sigmoid)
    prob = jnp.where(x >= 0.0, 1.0, e) / (1.0 + e)            # sigmoid(x)
    if gamma == 2.0:
        w_neg = prob * prob
        om = 1.0 - prob
        w_pos = om * om
    else:
        w_neg = prob ** gamma
        w_pos = (1.0 - prob) ** gamma
    # NOTE: softplus identities drop the reference's 1e-8 log-eps; exact and
    # stable, values diverge only where the focal weight is already ~0.
    g = alpha * w_pos * sp_nx - (1.0 - alpha) * w_neg * sp_x  # (P, tq) = pos-neg

    t_pad = c_ref.shape[1]
    # Per-query mean over P *and* broadcast across targets in a single MXU
    # contraction (MXU is otherwise idle):  g^T(P,tq) . ones(P,T_pad).
    # The class/coord weights are folded in so the epilogue is one scale.
    cls_scale = class_weight / n_pts
    if with_l1:
        cls_scale = cls_scale / coord_weight
    ones_pt = jnp.full((x.shape[0], t_pad), cls_scale, f32)
    acc = lax.dot_general(g, ones_pt, (((0,), (0,)), ((), ())),
                          preferred_element_type=f32)         # (tq, T_pad)

    if with_l1:
        out = pts_ref[...].astype(f32)                        # (tq, D)
        tgt_t = tgt_t_ref[...].astype(f32)                    # (D, T_pad)
        # L1 cdist as an unrolled accumulation over the tiny static D axis:
        # each partial is a lane-dense (tq, T_pad) slab of pure VPU work,
        # no (Q,T,D) intermediate, no cross-lane reduce.  Estimated VALU-bound
        # (3 VALU ops per vreg per d vs ~1 column lane-broadcast).
        # TODO(synk): bundle-audit on v6e/v7x (2 XLU units); if the column
        # broadcast binds, offload it to the idle MXU via
        # out[:, d:d+1] @ ones((1, T_pad)).
        for d in range(out.shape[1]):
            acc = acc + jnp.abs(out[:, d:d + 1] - tgt_t[d:d + 1, :])
        c_ref[...] = coord_weight * acc
    else:
        c_ref[...] = acc


# ----------------------------------------------------------------------------
# Tiling + jitted wrapper (single dispatch around the pallas_call)
# ----------------------------------------------------------------------------
def _select_tiling(Q, T_pad, n_tc):
    q8 = max(8, _round_up(Q, 8))
    # Keep the double-buffered output tile comfortably inside VMEM even for
    # large target counts (v7x has only 64 MiB physical VMEM).
    budget_rows = max(128, ((16 << 20) // (8 * T_pad)) // 128 * 128)
    if n_tc >= 2 and q8 > 8:
        tile_q = min(512, budget_rows)
        steps = _round_up(pl.cdiv(Q, tile_q), 2)     # even split across 2 TCs
        tile_q = min(_round_up(pl.cdiv(Q, steps), 128), tile_q)
        return steps, tile_q
    tile_q = min(1024, budget_rows)                  # single TC: big tiles
    if q8 <= tile_q:
        return 1, q8                                 # one step, no per-step overhead
    steps = pl.cdiv(Q, tile_q)
    return steps, _round_up(pl.cdiv(Q, steps), 128)


@functools.partial(
    jax.jit,
    static_argnames=("class_weight", "coord_weight", "focal_alpha",
                     "focal_gamma", "n_tc"))
def _matcher_cost_padded(pred_logits, pred_ctrl_points, tgt_ctrl_points, *,
                         class_weight, coord_weight, focal_alpha, focal_gamma,
                         n_tc):
    """Padded (Q_pad, T_pad) matching-cost matrix, single fused dispatch."""
    bs, nq, n_pts, _ = pred_logits.shape
    Q = bs * nq
    D = n_pts * 2
    T = int(tgt_ctrl_points.shape[0])

    T_pad = max(128, _round_up(T, 128))      # lane-dense output -> unmasked vst
    grid_steps, tile_q = _select_tiling(Q, T_pad, n_tc)
    Q_pad = grid_steps * tile_q

    # Input prep (reshape / transpose / pad) is fused by XLA into this single
    # jitted dispatch around the pallas_call.
    logits_t = jnp.transpose(pred_logits[..., 0].reshape(Q, n_pts)).astype(jnp.float32)
    out_pts = pred_ctrl_points.reshape(Q, D).astype(jnp.float32)
    tgt_t = jnp.transpose(tgt_ctrl_points.reshape(T, D)).astype(jnp.float32)
    if Q_pad > Q:
        logits_t = jnp.pad(logits_t, ((0, 0), (0, Q_pad - Q)))
        out_pts = jnp.pad(out_pts, ((0, Q_pad - Q), (0, 0)))
    if T_pad > T:
        tgt_t = jnp.pad(tgt_t, ((0, 0), (0, T_pad - T)))

    kernel = functools.partial(
        _matcher_cost_kernel,
        class_weight=float(class_weight), coord_weight=float(coord_weight),
        alpha=float(focal_alpha), gamma=float(focal_gamma), n_pts=int(n_pts))

    # VMEM budget: every operand (incl. the grid-invariant target block) gets
    # two buffers; generous margin, capped well under v7x's 64 MiB physical.
    per_step = 4 * 2 * (n_pts * tile_q + tile_q * D + D * T_pad + tile_q * T_pad)
    vmem_limit = int(min(max(4 * per_step, 16 << 20), 48 << 20))

    # TODO(synk): if T ever grows to thousands of targets, add a second grid
    # axis over T (tile_t <= 2048 on v7x, <= 4096 on v5e/v6e) instead of
    # keeping the whole (D, T_pad) block resident.
    return pl.pallas_call(
        kernel,
        out_shape=jax.ShapeDtypeStruct((Q_pad, T_pad), jnp.float32),
        grid=(grid_steps,),
        in_specs=[
            pl.BlockSpec((n_pts, tile_q), lambda i: (0, i)),  # logits^T (queries on lanes)
            pl.BlockSpec((tile_q, D), lambda i: (i, 0)),      # pred ctrl points
            pl.BlockSpec((D, T_pad), lambda i: (0, 0)),       # targets^T (resident)
        ],
        out_specs=pl.BlockSpec((tile_q, T_pad), lambda i: (i, 0)),
        compiler_params=pltpu.CompilerParams(
            dimension_semantics=("parallel",),
            vmem_limit_bytes=vmem_limit),
    )(logits_t, out_pts, tgt_t)


def ctrl_point_matcher_cost(pred_logits, pred_ctrl_points, tgt_ctrl_points, *,
                            class_weight=1.0, coord_weight=1.0,
                            focal_alpha=0.25, focal_gamma=2.0):
    """Returns the (bs, num_queries, num_targets) matching-cost matrix."""
    bs, nq = pred_logits.shape[:2]
    T = int(tgt_ctrl_points.shape[0])
    if T == 0:
        return jnp.zeros((bs, nq, 0), jnp.float32)
    C = _matcher_cost_padded(
        pred_logits, pred_ctrl_points, tgt_ctrl_points,
        class_weight=float(class_weight), coord_weight=float(coord_weight),
        focal_alpha=float(focal_alpha), focal_gamma=float(focal_gamma),
        n_tc=_tensorcores_per_chip())
    return C[:bs * nq, :T].reshape(bs, nq, T)


# ----------------------------------------------------------------------------
# Host-side linear sum assignment
# ----------------------------------------------------------------------------
def _lsa_fallback(cost):
    """NumPy-vectorized shortest-augmenting-path Hungarian (O(n^3))."""
    cost = np.asarray(cost, dtype=np.float64)
    transposed = cost.shape[0] > cost.shape[1]
    if transposed:
        cost = cost.T
    n, m = cost.shape                       # n <= m
    u = np.zeros(n + 1)
    v = np.zeros(m + 1)
    p = np.zeros(m + 1, dtype=np.int64)     # p[j] = row (1-based) matched to col j
    way = np.zeros(m + 1, dtype=np.int64)
    for i in range(1, n + 1):
        p[0] = i
        j0 = 0
        minv = np.full(m + 1, np.inf)
        used = np.zeros(m + 1, dtype=bool)
        while True:
            used[j0] = True
            i0 = p[j0]
            free = ~used
            free[0] = False
            cur = cost[i0 - 1, :] - u[i0] - v[1:]
            upd = free[1:] & (cur < minv[1:])
            minv[1:][upd] = cur[upd]
            way[1:][upd] = j0
            cand = np.where(free[1:], minv[1:], np.inf)
            j1 = int(np.argmin(cand)) + 1
            delta = cand[j1 - 1]
            u[p[used]] += delta
            v[used] -= delta
            minv[free] -= delta
            j0 = j1
            if p[j0] == 0:
                break
        while j0 != 0:
            j1 = way[j0]
            p[j0] = p[j1]
            j0 = j1
    rows = p[1:]
    cols = np.arange(1, m + 1)
    mask = rows != 0
    row_ind = rows[mask] - 1
    col_ind = cols[mask] - 1
    if transposed:
        row_ind, col_ind = col_ind, row_ind
    order = np.argsort(row_ind)
    return row_ind[order].astype(np.int64), col_ind[order].astype(np.int64)


def _linear_sum_assignment(cost):
    cost = np.asarray(cost, dtype=np.float64)
    if cost.size == 0 or min(cost.shape) == 0:
        return np.empty(0, dtype=np.int64), np.empty(0, dtype=np.int64)
    if _scipy_lsa is not None:
        r, c = _scipy_lsa(cost)
        return np.asarray(r, np.int64), np.asarray(c, np.int64)
    return _lsa_fallback(cost)


def _linear_sum_assignment_bruteforce(cost):
    """Exact reference by exhaustive search (tiny test matrices only)."""
    n_rows, n_cols = cost.shape
    col_ind = np.arange(n_cols)
    best_rows, best_cost = None, np.inf
    for rows in itertools.permutations(range(n_rows), n_cols):
        c = cost[list(rows), col_ind].sum()
        if c < best_cost:
            best_cost, best_rows = c, rows
    row_ind = np.asarray(best_rows)
    order = np.argsort(row_ind)
    return row_ind[order], col_ind[order], best_cost


# ----------------------------------------------------------------------------
# Matcher module
# ----------------------------------------------------------------------------
class CtrlPointHungarianMatcher:
    def __init__(self, class_weight=1.0, coord_weight=1.0,
                 focal_alpha=0.25, focal_gamma=2.0):
        assert class_weight != 0 or coord_weight != 0, "all costs cant be 0"
        self.class_weight = class_weight
        self.coord_weight = coord_weight
        self.alpha = focal_alpha
        self.gamma = focal_gamma

    def __call__(self, outputs, targets):
        pred_logits = outputs["pred_logits"]          # (bs, nq, n_pts, 1)
        pred_pts = outputs["pred_ctrl_points"]        # (bs, nq, n_pts, 2)
        bs, nq = pred_logits.shape[:2]
        sizes = [int(v["ctrl_points"].shape[0]) for v in targets]
        total = sum(sizes)
        if total == 0:
            empty = np.empty(0, dtype=np.int64)
            return [(empty.copy(), empty.copy()) for _ in range(bs)]

        tgt_cat = jnp.concatenate([v["ctrl_points"] for v in targets], axis=0)
        C_pad = _matcher_cost_padded(
            pred_logits, pred_pts, tgt_cat,
            class_weight=float(self.class_weight),
            coord_weight=float(self.coord_weight),
            focal_alpha=float(self.alpha), focal_gamma=float(self.gamma),
            n_tc=_tensorcores_per_chip())

        # Single host round-trip; all slicing/reshaping of the padded cost
        # happens in NumPy (no extra device ops).
        C_np = np.asarray(jax.device_get(C_pad))[:bs * nq, :total]
        C_np = C_np.reshape(bs, nq, total)

        # TODO(synk): the Hungarian assignment is an inherently sequential
        # combinatorial host-side algorithm with no clean Pallas equivalent.
        indices, offset = [], 0
        for i, s in enumerate(sizes):
            block = C_np[i, :, offset:offset + s]
            r, c = _linear_sum_assignment(block)
            indices.append((np.asarray(r, np.int64), np.asarray(c, np.int64)))
            offset += s
        return indices


# ----------------------------------------------------------------------------
# NumPy reference (mirrors the PyTorch spec, incl. the 1e-8 eps)
# ----------------------------------------------------------------------------
def _reference_cost_numpy(pred_logits, pred_pts, tgt_cat, cw, pw, alpha, gamma):
    bs, nq, n_pts, _ = pred_logits.shape
    Q = bs * nq
    prob = 1.0 / (1.0 + np.exp(-np.asarray(pred_logits, np.float64).reshape(Q, n_pts, 1)))
    neg = (1 - alpha) * prob ** gamma * -np.log(1 - prob + 1e-8)
    pos = alpha * (1 - prob) ** gamma * -np.log(prob + 1e-8)
    cost_class = (pos[..., 0] - neg[..., 0]).mean(-1, keepdims=True)
    out_pts = np.asarray(pred_pts, np.float64).reshape(Q, n_pts * 2)
    tgt_pts = np.asarray(tgt_cat, np.float64).reshape(tgt_cat.shape[0], -1)
    cdist = np.abs(out_pts[:, None, :] - tgt_pts[None, :, :]).sum(-1)
    return (cw * cost_class + pw * cdist).reshape(bs, nq, -1)


if __name__ == "__main__":
    key = jax.random.PRNGKey(0)
    bs, num_queries, n_ctrl_points = 2, 8, 8
    k1, k2, k3, k4, k5, k6 = jax.random.split(key, 6)

    pred_logits = jax.random.normal(k1, (bs, num_queries, n_ctrl_points, 1), jnp.float32)
    pred_ctrl_points = jax.random.uniform(k2, (bs, num_queries, n_ctrl_points, 2), jnp.float32)
    targets = [
        {"ctrl_points": jax.random.uniform(k3, (3, n_ctrl_points, 2), jnp.float32)},
        {"ctrl_points": jax.random.uniform(k4, (2, n_ctrl_points, 2), jnp.float32)},
    ]
    outputs = {"pred_logits": pred_logits, "pred_ctrl_points": pred_ctrl_points}

    matcher = CtrlPointHungarianMatcher(class_weight=2.0, coord_weight=5.0,
                                        focal_alpha=0.25, focal_gamma=2.0)

    # 1) Pallas cost matrix vs. NumPy reference (small shapes).
    tgt_cat = jnp.concatenate([v["ctrl_points"] for v in targets], axis=0)
    C = ctrl_point_matcher_cost(pred_logits, pred_ctrl_points, tgt_cat,
                                class_weight=2.0, coord_weight=5.0,
                                focal_alpha=0.25, focal_gamma=2.0)
    C = jax.block_until_ready(C)
    C_ref = _reference_cost_numpy(pred_logits, pred_ctrl_points, tgt_cat,
                                  2.0, 5.0, 0.25, 2.0)
    np.testing.assert_allclose(np.asarray(C), C_ref, rtol=1e-4, atol=1e-4)

    # 1b) A second, larger-Q config to exercise the tiled/megacore paths.
    pl2 = jax.random.normal(k5, (2, 128, n_ctrl_points, 1), jnp.float32)
    pp2 = jax.random.uniform(k6, (2, 128, n_ctrl_points, 2), jnp.float32)
    C2 = jax.block_until_ready(
        ctrl_point_matcher_cost(pl2, pp2, tgt_cat, class_weight=2.0,
                                coord_weight=5.0, focal_alpha=0.25, focal_gamma=2.0))
    C2_ref = _reference_cost_numpy(pl2, pp2, tgt_cat, 2.0, 5.0, 0.25, 2.0)
    np.testing.assert_allclose(np.asarray(C2), C2_ref, rtol=1e-4, atol=1e-4)

    # 2) Full matcher; validate the host Hungarian against exhaustive search.
    indices = matcher(outputs, targets)
    assert len(indices) == bs
    C_np = np.asarray(C)
    offset = 0
    for i, ((r, c), tgt) in enumerate(zip(indices, targets)):
        s = int(tgt["ctrl_points"].shape[0])
        assert r.shape[0] == s and c.shape[0] == s
        block = C_np[i, :, offset:offset + s]
        got_cost = block[r, c].sum()
        _, _, best_cost = _linear_sum_assignment_bruteforce(block)
        np.testing.assert_allclose(got_cost, best_cost, rtol=1e-6, atol=1e-6)
        offset += s

    # 3) T == 0 edge case (no targets in the whole batch).
    empty_targets = [{"ctrl_points": jnp.zeros((0, n_ctrl_points, 2), jnp.float32)}
                     for _ in range(bs)]
    empty_idx = matcher(outputs, empty_targets)
    assert len(empty_idx) == bs and all(r.size == 0 and c.size == 0 for r, c in empty_idx)

    print("KERNEL_OK")
</pallas_src>

<mosaic_0001>
module attributes {stable_mosaic.version = 11 : i64} {
  func.func @_matcher_cost_kernel(%arg0: i32, %arg1: memref<8x16xf32, #tpu.memory_space<vmem>>, %arg2: memref<16x16xf32, #tpu.memory_space<vmem>>, %arg3: memref<16x128xf32, #tpu.memory_space<vmem>>, %arg4: memref<16x128xf32, #tpu.memory_space<vmem>>) attributes {dimension_semantics = [#tpu.dimension_semantics<parallel>], iteration_bounds = array<i64: 1>, scalar_prefetch = 0 : i64, scratch_operands = 0 : i64, tpu.core_type = #tpu.core_type<tc>, window_params = [{transform_indices = @transform_0, window_bounds = array<i64: 8, 16>}, {transform_indices = @transform_1, window_bounds = array<i64: 16, 16>}, {pipeline_mode = #tpu.pipeline_mode<synchronous>, transform_indices = @transform_2, window_bounds = array<i64: 16, 128>}, {transform_indices = @transform_3, window_bounds = array<i64: 16, 128>}]} {
    %c0 = arith.constant 0 : index
    %c0_0 = arith.constant 0 : index
    %0 = vector.load %arg1[%c0, %c0_0] : memref<8x16xf32, #tpu.memory_space<vmem>>, vector<8x16xf32>
    %1 = math.absf %0 : vector<8x16xf32>
    %cst = arith.constant 0.000000e+00 : f32
    %2 = vector.broadcast %cst : f32 to vector<8x16xf32>
    %3 = arith.subf %2, %1 : vector<8x16xf32>
    %4 = math.exp %3 : vector<8x16xf32>
    %cst_1 = arith.constant 0.000000e+00 : f32
    %5 = vector.broadcast %cst_1 : f32 to vector<8x16xf32>
    %6 = arith.maximumf %0, %5 : vector<8x16xf32>
    %7 = math.log1p %4 : vector<8x16xf32>
    %8 = arith.addf %6, %7 : vector<8x16xf32>
    %9 = arith.subf %8, %0 : vector<8x16xf32>
    %cst_2 = arith.constant 0.000000e+00 : f32
    %10 = vector.broadcast %cst_2 : f32 to vector<8x16xf32>
    %11 = arith.cmpf oge, %0, %10 : vector<8x16xf32>
    %cst_3 = arith.constant 1.000000e+00 : f32
    %12 = vector.broadcast %cst_3 : f32 to vector<8x16xf32>
    %13 = arith.select %11, %12, %4 : vector<8x16xi1>, vector<8x16xf32>
    %cst_4 = arith.constant 1.000000e+00 : f32
    %14 = vector.broadcast %cst_4 : f32 to vector<8x16xf32>
    %15 = arith.addf %14, %4 : vector<8x16xf32>
    %16 = arith.divf %13, %15 : vector<8x16xf32>
    %17 = arith.mulf %16, %16 : vector<8x16xf32>
    %cst_5 = arith.constant 1.000000e+00 : f32
    %18 = vector.broadcast %cst_5 : f32 to vector<8x16xf32>
    %19 = arith.subf %18, %16 : vector<8x16xf32>
    %20 = arith.mulf %19, %19 : vector<8x16xf32>
    %cst_6 = arith.constant 2.500000e-01 : f32
    %21 = vector.broadcast %cst_6 : f32 to vector<8x16xf32>
    %22 = arith.mulf %21, %20 : vector<8x16xf32>
    %23 = arith.mulf %22, %9 : vector<8x16xf32>
    %cst_7 = arith.constant 7.500000e-01 : f32
    %24 = vector.broadcast %cst_7 : f32 to vector<8x16xf32>
    %25 = arith.mulf %24, %17 : vector<8x16xf32>
    %26 = arith.mulf %25, %8 : vector<8x16xf32>
    %27 = arith.subf %23, %26 : vector<8x16xf32>
    %cst_8 = arith.constant 5.000000e-02 : f32
    %28 = vector.broadcast %cst_8 : f32 to vector<8x128xf32>
    %cst_9 = arith.constant dense<0.000000e+00> : vector<16x128xf32>
    %29 = tpu.matmul %27, %28, %cst_9 {dimension_numbers = #tpu.dot_dimension_numbers<[0], [0], [1], [1], [0, 1, 1, 1], [], []>} : vector<8x16xf32>, vector<8x128xf32>, vector<16x128xf32> -> vector<16x128xf32>
    %c0_10 = arith.constant 0 : index
    %c0_11 = arith.constant 0 : index
    %30 = vector.load %arg2[%c0_10, %c0_11] : memref<16x16xf32, #tpu.memory_space<vmem>>, vector<16x16xf32>
    %c0_12 = arith.constant 0 : index
    %c0_13 = arith.constant 0 : index
    %31 = vector.load %arg3[%c0_12, %c0_13] : memref<16x128xf32, #tpu.memory_space<vmem>>, vector<16x128xf32>
    %32 = vector.extract_strided_slice %30 {offsets = [0, 0], sizes = [16, 1], strides = [1, 1]} : vector<16x16xf32> to vector<16x1xf32>
    %33 = vector.extract_strided_slice %31 {offsets = [0, 0], sizes = [1, 128], strides = [1, 1]} : vector<16x128xf32> to vector<1x128xf32>
    %34 = vector.broadcast %32 : vector<16x1xf32> to vector<16x128xf32>
    %35 = vector.broadcast %33 : vector<1x128xf32> to vector<16x128xf32>
    %36 = arith.subf %34, %35 : vector<16x128xf32>
    %37 = math.absf %36 : vector<16x128xf32>
    %38 = arith.addf %29, %37 : vector<16x128xf32>
    %39 = vector.extract_strided_slice %30 {offsets = [0, 1], sizes = [16, 1], strides = [1, 1]} : vector<16x16xf32> to vector<16x1xf32>
    %40 = vector.extract_strided_slice %31 {offsets = [1, 0], sizes = [1, 128], strides = [1, 1]} : vector<16x128xf32> to vector<1x128xf32>
    %41 = vector.broadcast %39 : vector<16x1xf32> to vector<16x128xf32>
    %42 = vector.broadcast %40 : vector<1x128xf32> to vector<16x128xf32>
    %43 = arith.subf %41, %42 : vector<16x128xf32>
    %44 = math.absf %43 : vector<16x128xf32>
    %45 = arith.addf %38, %44 : vector<16x128xf32>
    %46 = vector.extract_strided_slice %30 {offsets = [0, 2], sizes = [16, 1], strides = [1, 1]} : vector<16x16xf32> to vector<16x1xf32>
    %47 = vector.extract_strided_slice %31 {offsets = [2, 0], sizes = [1, 128], strides = [1, 1]} : vector<16x128xf32> to vector<1x128xf32>
    %48 = vector.broadcast %46 : vector<16x1xf32> to vector<16x128xf32>
    %49 = vector.broadcast %47 : vector<1x128xf32> to vector<16x128xf32>
    %50 = arith.subf %48, %49 : vector<16x128xf32>
    %51 = math.absf %50 : vector<16x128xf32>
    %52 = arith.addf %45, %51 : vector<16x128xf32>
    %53 = vector.extract_strided_slice %30 {offsets = [0, 3], sizes = [16, 1], strides = [1, 1]} : vector<16x16xf32> to vector<16x1xf32>
    %54 = vector.extract_strided_slice %31 {offsets = [3, 0], sizes = [1, 128], strides = [1, 1]} : vector<16x128xf32> to vector<1x128xf32>
    %55 = vector.broadcast %53 : vector<16x1xf32> to vector<16x128xf32>
    %56 = vector.broadcast %54 : vector<1x128xf32> to vector<16x128xf32>
    %57 = arith.subf %55, %56 : vector<16x128xf32>
    %58 = math.absf %57 : vector<16x128xf32>
    %59 = arith.addf %52, %58 : vector<16x128xf32>
    %60 = vector.extract_strided_slice %30 {offsets = [0, 4], sizes = [16, 1], strides = [1, 1]} : vector<16x16xf32> to vector<16x1xf32>
    %61 = vector.extract_strided_slice %31 {offsets = [4, 0], sizes = [1, 128], strides = [1, 1]} : vector<16x128xf32> to vector<1x128xf32>
    %62 = vector.broadcast %60 : vector<16x1xf32> to vector<16x128xf32>
    %63 = vector.broadcast %61 : vector<1x128xf32> to vector<16x128xf32>
    %64 = arith.subf %62, %63 : vector<16x128xf32>
    %65 = math.absf %64 : vector<16x128xf32>
    %66 = arith.addf %59, %65 : vector<16x128xf32>
    %67 = vector.extract_strided_slice %30 {offsets = [0, 5], sizes = [16, 1], strides = [1, 1]} : vector<16x16xf32> to vector<16x1xf32>
    %68 = vector.extract_strided_slice %31 {offsets = [5, 0], sizes = [1, 128], strides = [1, 1]} : vector<16x128xf32> to vector<1x128xf32>
    %69 = vector.broadcast %67 : vector<16x1xf32> to vector<16x128xf32>
    %70 = vector.broadcast %68 : vector<1x128xf32> to vector<16x128xf32>
    %71 = arith.subf %69, %70 : vector<16x128xf32>
    %72 = math.absf %71 : vector<16x128xf32>
    %73 = arith.addf %66, %72 : vector<16x128xf32>
    %74 = vector.extract_strided_slice %30 {offsets = [0, 6], sizes = [16, 1], strides = [1, 1]} : vector<16x16xf32> to vector<16x1xf32>
    %75 = vector.extract_strided_slice %31 {offsets = [6, 0], sizes = [1, 128], strides = [1, 1]} : vector<16x128xf32> to vector<1x128xf32>
    %76 = vector.broadcast %74 : vector<16x1xf32> to vector<16x128xf32>
    %77 = vector.broadcast %75 : vector<1x128xf32> to vector<16x128xf32>
    %78 = arith.subf %76, %77 : vector<16x128xf32>
    %79 = math.absf %78 : vector<16x128xf32>
    %80 = arith.addf %73, %79 : vector<16x128xf32>
    %81 = vector.extract_strided_slice %30 {offsets = [0, 7], sizes = [16, 1], strides = [1, 1]} : vector<16x16xf32> to vector<16x1xf32>
    %82 = vector.extract_strided_slice %31 {offsets = [7, 0], sizes = [1, 128], strides = [1, 1]} : vector<16x128xf32> to vector<1x128xf32>
    %83 = vector.broadcast %81 : vector<16x1xf32> to vector<16x128xf32>
    %84 = vector.broadcast %82 : vector<1x128xf32> to vector<16x128xf32>
    %85 = arith.subf %83, %84 : vector<16x128xf32>
    %86 = math.absf %85 : vector<16x128xf32>
    %87 = arith.addf %80, %86 : vector<16x128xf32>
    %88 = vector.extract_strided_slice %30 {offsets = [0, 8], sizes = [16, 1], strides = [1, 1]} : vector<16x16xf32> to vector<16x1xf32>
    %89 = vector.extract_strided_slice %31 {offsets = [8, 0], sizes = [1, 128], strides = [1, 1]} : vector<16x128xf32> to vector<1x128xf32>
    %90 = vector.broadcast %88 : vector<16x1xf32> to vector<16x128xf32>
    %91 = vector.broadcast %89 : vector<1x128xf32> to vector<16x128xf32>
    %92 = arith.subf %90, %91 : vector<16x128xf32>
    %93 = math.absf %92 : vector<16x128xf32>
    %94 = arith.addf %87, %93 : vector<16x128xf32>
    %95 = vector.extract_strided_slice %30 {offsets = [0, 9], sizes = [16, 1], strides = [1, 1]} : vector<16x16xf32> to vector<16x1xf32>
    %96 = vector.extract_strided_slice %31 {offsets = [9, 0], sizes = [1, 128], strides = [1, 1]} : vector<16x128xf32> to vector<1x128xf32>
    %97 = vector.broadcast %95 : vector<16x1xf32> to vector<16x128xf32>
    %98 = vector.broadcast %96 : vector<1x128xf32> to vector<16x128xf32>
    %99 = arith.subf %97, %98 : vector<16x128xf32>
    %100 = math.absf %99 : vector<16x128xf32>
    %101 = arith.addf %94, %100 : vector<16x128xf32>
    %102 = vector.extract_strided_slice %30 {offsets = [0, 10], sizes = [16, 1], strides = [1, 1]} : vector<16x16xf32> to vector<16x1xf32>
    %103 = vector.extract_strided_slice %31 {offsets = [10, 0], sizes = [1, 128], strides = [1, 1]} : vector<16x128xf32> to vector<1x128xf32>
    %104 = vector.broadcast %102 : vector<16x1xf32> to vector<16x128xf32>
    %105 = vector.broadcast %103 : vector<1x128xf32> to vector<16x128xf32>
    %106 = arith.subf %104, %105 : vector<16x128xf32>
    %107 = math.absf %106 : vector<16x128xf32>
    %108 = arith.addf %101, %107 : vector<16x128xf32>
    %109 = vector.extract_strided_slice %30 {offsets = [0, 11], sizes = [16, 1], strides = [1, 1]} : vector<16x16xf32> to vector<16x1xf32>
    %110 = vector.extract_strided_slice %31 {offsets = [11, 0], sizes = [1, 128], strides = [1, 1]} : vector<16x128xf32> to vector<1x128xf32>
    %111 = vector.broadcast %109 : vector<16x1xf32> to vector<16x128xf32>
    %112 = vector.broadcast %110 : vector<1x128xf32> to vector<16x128xf32>
    %113 = arith.subf %111, %112 : vector<16x128xf32>
    %114 = math.absf %113 : vector<16x128xf32>
    %115 = arith.addf %108, %114 : vector<16x128xf32>
    %116 = vector.extract_strided_slice %30 {offsets = [0, 12], sizes = [16, 1], strides = [1, 1]} : vector<16x16xf32> to vector<16x1xf32>
    %117 = vector.extract_strided_slice %31 {offsets = [12, 0], sizes = [1, 128], strides = [1, 1]} : vector<16x128xf32> to vector<1x128xf32>
    %118 = vector.broadcast %116 : vector<16x1xf32> to vector<16x128xf32>
    %119 = vector.broadcast %117 : vector<1x128xf32> to vector<16x128xf32>
    %120 = arith.subf %118, %119 : vector<16x128xf32>
    %121 = math.absf %120 : vector<16x128xf32>
    %122 = arith.addf %115, %121 : vector<16x128xf32>
    %123 = vector.extract_strided_slice %30 {offsets = [0, 13], sizes = [16, 1], strides = [1, 1]} : vector<16x16xf32> to vector<16x1xf32>
    %124 = vector.extract_strided_slice %31 {offsets = [13, 0], sizes = [1, 128], strides = [1, 1]} : vector<16x128xf32> to vector<1x128xf32>
    %125 = vector.broadcast %123 : vector<16x1xf32> to vector<16x128xf32>
    %126 = vector.broadcast %124 : vector<1x128xf32> to vector<16x128xf32>
    %127 = arith.subf %125, %126 : vector<16x128xf32>
    %128 = math.absf %127 : vector<16x128xf32>
    %129 = arith.addf %122, %128 : vector<16x128xf32>
    %130 = vector.extract_strided_slice %30 {offsets = [0, 14], sizes = [16, 1], strides = [1, 1]} : vector<16x16xf32> to vector<16x1xf32>
    %131 = vector.extract_strided_slice %31 {offsets = [14, 0], sizes = [1, 128], strides = [1, 1]} : vector<16x128xf32> to vector<1x128xf32>
    %132 = vector.broadcast %130 : vector<16x1xf32> to vector<16x128xf32>
    %133 = vector.broadcast %131 : vector<1x128xf32> to vector<16x128xf32>
    %134 = arith.subf %132, %133 : vector<16x128xf32>
    %135 = math.absf %134 : vector<16x128xf32>
    %136 = arith.addf %129, %135 : vector<16x128xf32>
    %137 = vector.extract_strided_slice %30 {offsets = [0, 15], sizes = [16, 1], strides = [1, 1]} : vector<16x16xf32> to vector<16x1xf32>
    %138 = vector.extract_strided_slice %31 {offsets = [15, 0], sizes = [1, 128], strides = [1, 1]} : vector<16x128xf32> to vector<1x128xf32>
    %139 = vector.broadcast %137 : vector<16x1xf32> to vector<16x128xf32>
    %140 = vector.broadcast %138 : vector<1x128xf32> to vector<16x128xf32>
    %141 = arith.subf %139, %140 : vector<16x128xf32>
    %142 = math.absf %141 : vector<16x128xf32>
    %143 = arith.addf %136, %142 : vector<16x128xf32>
    %cst_14 = arith.constant 5.000000e+00 : f32
    %144 = vector.broadcast %cst_14 : f32 to vector<16x128xf32>
    %145 = arith.mulf %144, %143 : vector<16x128xf32>
    %c0_15 = arith.constant 0 : index
    %c0_16 = arith.constant 0 : index
    %146 = vector.load %arg4[%c0_15, %c0_16] : memref<16x128xf32, #tpu.memory_space<vmem>>, vector<16x128xf32>
    tpu.vector_store %arg4[%c0_15, %c0_16], %145 {strides = array<i32>} : memref<16x128xf32, #tpu.memory_space<vmem>>, vector<16x128xf32>,
    return
  }
  func.func @transform_0(%arg0: i32) -> (i32, i32) {
    %c0_i32 = arith.constant 0 : i32
    %c0_i32_0 = arith.constant 0 : i32
    return %c0_i32, %arg0 : i32, i32
  }
  func.func @transform_1(%arg0: i32) -> (i32, i32) {
    %c0_i32 = arith.constant 0 : i32
    %c0_i32_0 = arith.constant 0 : i32
    return %arg0, %c0_i32 : i32, i32
  }
  func.func @transform_2(%arg0: i32) -> (i32, i32) {
    %c0_i32 = arith.constant 0 : i32
    %c0_i32_0 = arith.constant 0 : i32
    %c0_i32_1 = arith.constant 0 : i32
    return %c0_i32, %c0_i32_0 : i32, i32
  }
  func.func @transform_3(%arg0: i32) -> (i32, i32) {
    %c0_i32 = arith.constant 0 : i32
    %c0_i32_0 = arith.constant 0 : i32
    return %arg0, %c0_i32 : i32, i32
  }
}

</mosaic_0001>

<llo_original>
// kernel: _matcher_cost_padded.1
$region0: #{_matcher_cost_padded.1}
  #allocation0 [shape = 'u32[]', space=smem, size = 0x4, offset = 0x4, fixed_abs, tag = 'smem constant byte address 0x4 - core index']
  #allocation1 [shape = 'u32[144,128]{1,0:T(1,128)}', space=vmem, size = 0x12000, scoped, tag = 'internal scratch']
  %s0 = inlined_call_operand.vmem [shape: f32[8,16], index: 0, kind: input, shape index: {}]
  %s1 = inlined_call_operand.vmem [shape: f32[16,16], index: 1, kind: input, shape index: {}]
  %s2 = inlined_call_operand.vmem [shape: f32[16,128], index: 2, kind: input, shape index: {}]
  %s3 = inlined_call_operand.hbm [shape: f32[16,128], index: 3, kind: output, shape index: {}]
  %s4 = sld [smem:[#allocation0]]
  $region22: #{_matcher_cost_padded.1} parent=0
    _
  %s6 = ssub.s32 1, %s4
  %s7 = scalar_select 0, %s6, %s4
  $region1: #{_matcher_cost_padded.1} parent=0
    #allocation2 [shape = 'u8[8192]{0}', space=vmem, size = 0x2000, scoped, tag = 'output window, operand 0, single buffered']
    #allocation3 [shape = 's32[1]{0}', space=sflag, size = 0x4, scoped, tag = 'scoped memory for _matcher_cost_padded.1']
    %8 = vsyncpa [#allocation3], 0
    // Predicated region
    $region2: #{_matcher_cost_padded.1} parent=1 // pred_check
      _
    $region3: #{_matcher_cost_padded.1} parent=1 // pred_check_branch
      %10 = sbr.rel (0) target = $region5
    $region4: #{_matcher_cost_padded.1} parent=1 // pred_region
      _
    $region5: #{_matcher_cost_padded.1} parent=1 // pred_fallthru
      _
    // Predicated region
    $region6: #{_matcher_cost_padded.1} parent=1 // pred_check
      _
    $region7: #{_matcher_cost_padded.1} parent=1 // pred_check_branch
      %12 = sbr.rel (0) target = $region9
    $region8: #{_matcher_cost_padded.1} parent=1 // pred_region
      _
    $region9: #{_matcher_cost_padded.1} parent=1 // pred_fallthru
      _
    // Predicated region
    $region10: #{_matcher_cost_padded.1} parent=1 // pred_check
      _
    $region11: #{_matcher_cost_padded.1} parent=1 // pred_check_branch
      %14 = sbr.rel (0) target = $region13
    $region12: #{_matcher_cost_padded.1} parent=1 // pred_region
      _
    $region13: #{_matcher_cost_padded.1} parent=1 // pred_fallthru
      _
    %v15 = vld [vmem:[%s0] sm:$0xff]
    %v16 = vand.u32 2147483647, %v15
    %v17 = vsub.f32 0.0, %v16
    %v18 = vmul.f32 %v17, 1.442695
    %v19 = vpow.pop %v18
    %v20 = vmax.f32 %v15, 0.0
    %v21 = vadd.f32 %v19, 1.0
    %v22 = vlog2.pop %v21
    %v23 = vmul.f32 %v22, 0.6931472
    %v24 = vmul.f32 -0.5, %v19
    %v25 = vadd.f32 %v24, 1.0
    %v26 = vmul.f32 %v25, %v19
    %v27 = vand.u32 2147483647, %v19
    %vm28 = vcmp.lt.f32.partialorder %v27, 0.0004427343
    %v29 = vsel %vm28, %v26, %v23
    %v30 = vadd.f32 %v20, %v29
    %v31 = vsub.f32 %v30, %v15
    %vm32 = vcmp.ge.f32.partialorder %v15, 0.0
    %v33 = vsel %vm32, 1.0, %v19
    %v34 = vadd.f32 %v19, 1.0
    %v35 = vrcp.pop %v34
    %v36 = vmul.f32 %v33, %v35
    %v37 = vmul.f32 %v36, %v36
    %v38 = vsub.f32 1.0, %v36
    %v39 = vmul.f32 %v38, %v38
    %v40 = vmul.f32 %v39, 0.25
    %v41 = vmul.f32 %v40, %v31
    %v42 = vmul.f32 %v37, 0.75
    %v43 = vmul.f32 %v42, %v30
    %v44 = vsub.f32 %v41, %v43
    %v45 = vld [vmem:[%s1] sm:$0xff]
    %v46 = vld [vmem:[%s1 + $0x8] sm:$0xff]
    %v47 = vld [vmem:[%s2] sm:$0xff]
    %v48 = vld [vmem:[%s2 + $0x8] sm:$0xff]
    %50 = vset.pattern.permute.xlu0 0
    %51 = vperm.xlu0 %50, %v45
    %v52 = vpop.permute.xlu0 %51
    %55 = vset.pattern.permute.xlu0 0
    %56 = vperm.xlu0 %55, %v46
    %v57 = vpop.permute.xlu0 %56
    %v59 = vlaneseq
    %v60 = vshrl.u32 %v59, 7
    %v61 = vsub.s32 0, %v60
    %v62 = vrot.slane %v47, %v61
    %v63 = vsub.f32 %v52, %v62
    %v64 = vsub.f32 %v57, %v62
    %v65 = vand.u32 2147483647, %v63
    %v66 = vand.u32 2147483647, %v64
    %67 = vxpose.xlu0.b32.start [1/16] %v44, 128
    %68 = vxpose.xlu0.b32.cont [2/16] 0.0, 128
    %69 = vxpose.xlu0.b32.cont [3/16] 0.0, 128
    %70 = vxpose.xlu0.b32.cont [4/16] 0.0, 128
    %71 = vxpose.xlu0.b32.cont [5/16] 0.0, 128
    %72 = vxpose.xlu0.b32.cont [6/16] 0.0, 128
    %73 = vxpose.xlu0.b32.cont [7/16] 0.0, 128
    %74 = vxpose.xlu0.b32.cont [8/16] 0.0, 128
    %75 = vxpose.xlu0.b32.cont [9/16] 0.0, 128
    %76 = vxpose.xlu0.b32.cont [10/16] 0.0, 128
    %77 = vxpose.xlu0.b32.cont [11/16] 0.0, 128
    %78 = vxpose.xlu0.b32.cont [12/16] 0.0, 128
    %79 = vxpose.xlu0.b32.cont [13/16] 0.0, 128
    %80 = vxpose.xlu0.b32.cont [14/16] 0.0, 128
    %81 = vxpose.xlu0.b32.cont [15/16] 0.0, 128
    %82 = vxpose.xlu0.b32.end [16/16] 0.0, 128
    %v83 = vpop.trf.xlu0
    %v84 = vpop.trf.xlu0
    %v85 = vpop.trf.xlu0
    %v86 = vpop.trf.xlu0
    %v87 = vpop.trf.xlu0
    %v88 = vpop.trf.xlu0
    %v89 = vpop.trf.xlu0
    %v90 = vpop.trf.xlu0
    %v91 = vpop.trf.xlu0
    %v92 = vpop.trf.xlu0
    %v93 = vpop.trf.xlu0
    %v94 = vpop.trf.xlu0
    %v95 = vpop.trf.xlu0
    %v96 = vpop.trf.xlu0
    %v97 = vpop.trf.xlu0
    %v98 = vpop.trf.xlu0
    %vm99 = vcmask 64512
    %v101 = vsel %vm99, %v83, 0
    %v104 = vsel %vm99, %v84, 0
    %106 = vmatprep.subr.mxu0 0.0
    %107 = vmatpush1.msra.mxu0 0.05
    %108 = vmatprep.subr.mxu0 0.0
    %109 = vmatpush1.msra.mxu0 0.0
    %110 = vmatprep.subr.mxu0 0.0
    %111 = vmatpush1.msra.mxu0 0.0
    %112 = vmatprep.subr.mxu0 0.0
    %113 = vmatpush1.msra.mxu0 0.0
    %114 = vmatprep.subr.mxu0 0.0
    %115 = vmatpush1.msra.mxu0 0.0
    %116 = vmatprep.subr.mxu0 0.0
    %117 = vmatpush1.msra.mxu0 0.0
    %118 = vmatprep.subr.mxu0 0.0
    %119 = vmatpush1.msra.mxu0 0.0
    %120 = vmatprep.subr.mxu0 0.0
    %121 = vmatpush1.msra.mxu0 0.0
    %122 = vmatprep.subr.mxu0 0.0
    %123 = vmatpush1.msra.mxu0 0.0
    %124 = vmatprep.subr.mxu0 0.0
    %125 = vmatpush1.msra.mxu0 0.0
    %126 = vmatprep.subr.mxu0 0.0
    %127 = vmatpush1.msra.mxu0 0.0
    %128 = vmatprep.subr.mxu0 0.0
    %129 = vmatpush1.msra.mxu0 0.0
    %130 = vmatprep.subr.mxu0 0.0
    %131 = vmatpush1.msra.mxu0 0.0
    %132 = vmatprep.subr.mxu0 0.0
    %133 = vmatpush1.msra.mxu0 0.0
    %134 = vmatprep.subr.mxu0 0.0
    %135 = vmatpush1.msra.mxu0 0.0
    %136 = vmatprep.subr.mxu0 0.0
    %137 = vmatpush1.msra.mxu0 0.0
    %138 = vmatprep.subr.mxu0 0.0
    %139 = vmatpush1.msra.mxu0 0.0
    %140 = vmatprep.subr.mxu0 0.0
    %141 = vmatpush1.msra.mxu0 0.0
    %142 = vmatprep.subr.mxu0 0.0
    %143 = vmatpush1.msra.mxu0 0.0
    %144 = vmatprep.subr.mxu0 0.0
    %145 = vmatpush1.msra.mxu0 0.0
    %146 = vmatprep.subr.mxu0 0.0
    %147 = vmatpush1.msra.mxu0 0.0
    %148 = vmatprep.subr.mxu0 0.0
    %149 = vmatpush1.msra.mxu0 0.0
    %150 = vmatprep.subr.mxu0 0.0
    %151 = vmatpush1.msra.mxu0 0.0
    %152 = vmatprep.subr.mxu0 0.0
    %153 = vmatpush1.msra.mxu0 0.0
    %154 = vmatprep.subr.mxu0 0.0
    %155 = vmatpush1.msra.mxu0 0.0
    %156 = vmatprep.subr.mxu0 0.0
    %157 = vmatpush1.msra.mxu0 0.0
    %158 = vmatprep.subr.mxu0 0.0
    %159 = vmatpush1.msra.mxu0 0.0
    %160 = vmatprep.subr.mxu0 0.0
    %161 = vmatpush1.msra.mxu0 0.0
    %162 = vmatprep.subr.mxu0 0.0
    %163 = vmatpush1.msra.mxu0 0.0
    %164 = vmatprep.subr.mxu0 0.0
    %165 = vmatpush1.msra.mxu0 0.0
    %166 = vmatprep.subr.mxu0 0.0
    %167 = vmatpush1.msra.mxu0 0.0
    %168 = vmatprep.subr.mxu0 0.0
    %169 = vmatpush1.msra.mxu0 0.0
    %170 = vmatprep.mubr.f32.mxu0 0.0
    %171 = vmatmul.mubr.f32.gmra.mrb[0].mxu0 %v101
    %v172 = vpop.f32.mrb[0].mxu0
    %v173 = vadd.f32 %v65, %v172
    %v174 = vpop.f32.mrb[0].mxu0
    %175 = vmatprep.mubr.f32.mxu0 0.0
    %176 = vmatmul.mubr.f32.gmra.mrb[0].mxu0 %v104
    %v177 = vpop.f32.mrb[0].mxu0
    %v178 = vadd.f32 %v66, %v177
    %v179 = vpop.f32.mrb[0].mxu0
    %180 = vdwg.mxu0
    %181 = vset.pattern.permute.xlu0 1
    %182 = vperm.xlu0 %181, %v45
    %v183 = vpop.permute.xlu0 %182
    %185 = vset.pattern.permute.xlu0 1
    %186 = vperm.xlu0 %185, %v46
    %v187 = vpop.permute.xlu0 %186
    %v189 = vlaneseq
    %v190 = vshrl.u32 %v189, 7
    %v191 = vsub.s32 1, %v190
    %v192 = vrot.slane %v47, %v191
    %v193 = vsub.f32 %v183, %v192
    %v194 = vsub.f32 %v187, %v192
    %v195 = vand.u32 2147483647, %v193
    %v196 = vand.u32 2147483647, %v194
    %v197 = vadd.f32 %v173, %v195
    %v198 = vadd.f32 %v178, %v196
    %199 = vset.pattern.permute.xlu0 2
    %200 = vperm.xlu0 %199, %v45
    %v201 = vpop.permute.xlu0 %200
    %203 = vset.pattern.permute.xlu0 2
    %204 = vperm.xlu0 %203, %v46
    %v205 = vpop.permute.xlu0 %204
    %v207 = vlaneseq
    %v208 = vshrl.u32 %v207, 7
    %v209 = vsub.s32 2, %v208
    %v210 = vrot.slane %v47, %v209
    %v211 = vsub.f32 %v201, %v210
    %v212 = vsub.f32 %v205, %v210
    %v213 = vand.u32 2147483647, %v211
    %v214 = vand.u32 2147483647, %v212
    %v215 = vadd.f32 %v197, %v213
    %v216 = vadd.f32 %v198, %v214
    %217 = vset.pattern.permute.xlu0 3
    %218 = vperm.xlu0 %217, %v45
    %v219 = vpop.permute.xlu0 %218
    %221 = vset.pattern.permute.xlu0 3
    %222 = vperm.xlu0 %221, %v46
    %v223 = vpop.permute.xlu0 %222
    %v225 = vlaneseq
    %v226 = vshrl.u32 %v225, 7
    %v227 = vsub.s32 3, %v226
    %v228 = vrot.slane %v47, %v227
    %v229 = vsub.f32 %v219, %v228
    %v230 = vsub.f32 %v223, %v228
    %v231 = vand.u32 2147483647, %v229
    %v232 = vand.u32 2147483647, %v230
    %v233 = vadd.f32 %v215, %v231
    %v234 = vadd.f32 %v216, %v232
    %235 = vset.pattern.permute.xlu0 4
    %236 = vperm.xlu0 %235, %v45
    %v237 = vpop.permute.xlu0 %236
    %239 = vset.pattern.permute.xlu0 4
    %240 = vperm.xlu0 %239, %v46
    %v241 = vpop.permute.xlu0 %240
    %v243 = vlaneseq
    %v244 = vshrl.u32 %v243, 7
    %v245 = vsub.s32 4, %v244
    %v246 = vrot.slane %v47, %v245
    %v247 = vsub.f32 %v237, %v246
    %v248 = vsub.f32 %v241, %v246
    %v249 = vand.u32 2147483647, %v247
    %v250 = vand.u32 2147483647, %v248
    %v251 = vadd.f32 %v233, %v249
    %v252 = vadd.f32 %v234, %v250
    %253 = vset.pattern.permute.xlu0 5
    %254 = vperm.xlu0 %253, %v45
    %v255 = vpop.permute.xlu0 %254
    %257 = vset.pattern.permute.xlu0 5
    %258 = vperm.xlu0 %257, %v46
    %v259 = vpop.permute.xlu0 %258
    %v261 = vlaneseq
    %v262 = vshrl.u32 %v261, 7
    %v263 = vsub.s32 5, %v262
    %v264 = vrot.slane %v47, %v263
    %v265 = vsub.f32 %v255, %v264
    %v266 = vsub.f32 %v259, %v264
    %v267 = vand.u32 2147483647, %v265
    %v268 = vand.u32 2147483647, %v266
    %v269 = vadd.f32 %v251, %v267
    %v270 = vadd.f32 %v252, %v268
    %271 = vset.pattern.permute.xlu0 6
    %272 = vperm.xlu0 %271, %v45
    %v273 = vpop.permute.xlu0 %272
    %275 = vset.pattern.permute.xlu0 6
    %276 = vperm.xlu0 %275, %v46
    %v277 = vpop.permute.xlu0 %276
    %v279 = vlaneseq
    %v280 = vshrl.u32 %v279, 7
    %v281 = vsub.s32 6, %v280
    %v282 = vrot.slane %v47, %v281
    %v283 = vsub.f32 %v273, %v282
    %v284 = vsub.f32 %v277, %v282
    %v285 = vand.u32 2147483647, %v283
    %v286 = vand.u32 2147483647, %v284
    %v287 = vadd.f32 %v269, %v285
    %v288 = vadd.f32 %v270, %v286
    %289 = vset.pattern.permute.xlu0 7
    %290 = vperm.xlu0 %289, %v45
    %v291 = vpop.permute.xlu0 %290
    %293 = vset.pattern.permute.xlu0 7
    %294 = vperm.xlu0 %293, %v46
    %v295 = vpop.permute.xlu0 %294
    %v297 = vlaneseq
    %v298 = vshrl.u32 %v297, 7
    %v299 = vsub.s32 7, %v298
    %v300 = vrot.slane %v47, %v299
    %v301 = vsub.f32 %v291, %v300
    %v302 = vsub.f32 %v295, %v300
    %v303 = vand.u32 2147483647, %v301
    %v304 = vand.u32 2147483647, %v302
    %v305 = vadd.f32 %v287, %v303
    %v306 = vadd.f32 %v288, %v304
    %307 = vset.pattern.permute.xlu0 8
    %308 = vperm.xlu0 %307, %v45
    %v309 = vpop.permute.xlu0 %308
    %311 = vset.pattern.permute.xlu0 8
    %312 = vperm.xlu0 %311, %v46
    %v313 = vpop.permute.xlu0 %312
    %v315 = vlaneseq
    %v316 = vshrl.u32 %v315, 7
    %v317 = vsub.s32 0, %v316
    %v318 = vrot.slane %v48, %v317
    %v319 = vsub.f32 %v309, %v318
    %v320 = vsub.f32 %v313, %v318
    %v321 = vand.u32 2147483647, %v319
    %v322 = vand.u32 2147483647, %v320
    %v323 = vadd.f32 %v305, %v321
    %v324 = vadd.f32 %v306, %v322
    %325 = vset.pattern.permute.xlu0 9
    %326 = vperm.xlu0 %325, %v45
    %v327 = vpop.permute.xlu0 %326
    %329 = vset.pattern.permute.xlu0 9
    %330 = vperm.xlu0 %329, %v46
    %v331 = vpop.permute.xlu0 %330
    %v333 = vlaneseq
    %v334 = vshrl.u32 %v333, 7
    %v335 = vsub.s32 1, %v334
    %v336 = vrot.slane %v48, %v335
    %v337 = vsub.f32 %v327, %v336
    %v338 = vsub.f32 %v331, %v336
    %v339 = vand.u32 2147483647, %v337
    %v340 = vand.u32 2147483647, %v338
    %v341 = vadd.f32 %v323, %v339
    %v342 = vadd.f32 %v324, %v340
    %343 = vset.pattern.permute.xlu0 10
    %344 = vperm.xlu0 %343, %v45
    %v345 = vpop.permute.xlu0 %344
    %347 = vset.pattern.permute.xlu0 10
    %348 = vperm.xlu0 %347, %v46
    %v349 = vpop.permute.xlu0 %348
    %v351 = vlaneseq
    %v352 = vshrl.u32 %v351, 7
    %v353 = vsub.s32 2, %v352
    %v354 = vrot.slane %v48, %v353
    %v355 = vsub.f32 %v345, %v354
    %v356 = vsub.f32 %v349, %v354
    %v357 = vand.u32 2147483647, %v355
    %v358 = vand.u32 2147483647, %v356
    %v359 = vadd.f32 %v341, %v357
    %v360 = vadd.f32 %v342, %v358
    %361 = vset.pattern.permute.xlu0 11
    %362 = vperm.xlu0 %361, %v45
    %v363 = vpop.permute.xlu0 %362
    %365 = vset.pattern.permute.xlu0 11
    %366 = vperm.xlu0 %365, %v46
    %v367 = vpop.permute.xlu0 %366
    %v369 = vlaneseq
    %v370 = vshrl.u32 %v369, 7
    %v371 = vsub.s32 3, %v370
    %v372 = vrot.slane %v48, %v371
    %v373 = vsub.f32 %v363, %v372
    %v374 = vsub.f32 %v367, %v372
    %v375 = vand.u32 2147483647, %v373
    %v376 = vand.u32 2147483647, %v374
    %v377 = vadd.f32 %v359, %v375
    %v378 = vadd.f32 %v360, %v376
    %379 = vset.pattern.permute.xlu0 12
    %380 = vperm.xlu0 %379, %v45
    %v381 = vpop.permute.xlu0 %380
    %383 = vset.pattern.permute.xlu0 12
    %384 = vperm.xlu0 %383, %v46
    %v385 = vpop.permute.xlu0 %384
    %v387 = vlaneseq
    %v388 = vshrl.u32 %v387, 7
    %v389 = vsub.s32 4, %v388
    %v390 = vrot.slane %v48, %v389
    %v391 = vsub.f32 %v381, %v390
    %v392 = vsub.f32 %v385, %v390
    %v393 = vand.u32 2147483647, %v391
    %v394 = vand.u32 2147483647, %v392
    %v395 = vadd.f32 %v377, %v393
    %v396 = vadd.f32 %v378, %v394
    %397 = vset.pattern.permute.xlu0 13
    %398 = vperm.xlu0 %397, %v45
    %v399 = vpop.permute.xlu0 %398
    %401 = vset.pattern.permute.xlu0 13
    %402 = vperm.xlu0 %401, %v46
    %v403 = vpop.permute.xlu0 %402
    %v405 = vlaneseq
    %v406 = vshrl.u32 %v405, 7
    %v407 = vsub.s32 5, %v406
    %v408 = vrot.slane %v48, %v407
    %v409 = vsub.f32 %v399, %v408
    %v410 = vsub.f32 %v403, %v408
    %v411 = vand.u32 2147483647, %v409
    %v412 = vand.u32 2147483647, %v410
    %v413 = vadd.f32 %v395, %v411
    %v414 = vadd.f32 %v396, %v412
    %415 = vset.pattern.permute.xlu0 14
    %416 = vperm.xlu0 %415, %v45
    %v417 = vpop.permute.xlu0 %416
    %419 = vset.pattern.permute.xlu0 14
    %420 = vperm.xlu0 %419, %v46
    %v421 = vpop.permute.xlu0 %420
    %v423 = vlaneseq
    %v424 = vshrl.u32 %v423, 7
    %v425 = vsub.s32 6, %v424
    %v426 = vrot.slane %v48, %v425
    %v427 = vsub.f32 %v417, %v426
    %v428 = vsub.f32 %v421, %v426
    %v429 = vand.u32 2147483647, %v427
    %v430 = vand.u32 2147483647, %v428
    %v431 = vadd.f32 %v413, %v429
    %v432 = vadd.f32 %v414, %v430
    %433 = vset.pattern.permute.xlu0 15
    %434 = vperm.xlu0 %433, %v45
    %v435 = vpop.permute.xlu0 %434
    %437 = vset.pattern.permute.xlu0 15
    %438 = vperm.xlu0 %437, %v46
    %v439 = vpop.permute.xlu0 %438
    %v441 = vlaneseq
    %v442 = vshrl.u32 %v441, 7
    %v443 = vsub.s32 7, %v442
    %v444 = vrot.slane %v48, %v443
    %v445 = vsub.f32 %v435, %v444
    %v446 = vsub.f32 %v439, %v444
    %v447 = vand.u32 2147483647, %v445
    %v448 = vand.u32 2147483647, %v446
    %v449 = vadd.f32 %v431, %v447
    %v450 = vadd.f32 %v432, %v448
    %v451 = vmul.f32 %v449, 5.0
    %v452 = vmul.f32 %v450, 5.0
    %453 = vst [vmem:[#allocation2] sm:$0xff] %v451
    %454 = vst [vmem:[#allocation2 + $0x8] sm:$0xff] %v452
    // Predicated region
    $region14: #{_matcher_cost_padded.1} parent=1 // pred_check
      _
    $region15: #{_matcher_cost_padded.1} parent=1 // pred_check_branch
      %456 = sbr.rel (0) target = $region17
    $region16: #{_matcher_cost_padded.1} parent=1 // pred_region
      %s458 = ssub.s32 256, 256
      %459 = vsyncadd [#allocation3], %s458
      %s460 = sshll.u32 [#allocation2], 4
      %s461 = int_to_ptr.vmem [resolvable:$true] %s460
      %466 = dma.vmem_to_hbm [thread:$0]  %s461, 256, %s3, [#allocation3], 128, 128, 8
    $region17: #{_matcher_cost_padded.1} parent=1 // pred_fallthru
      _
    // Predicated region
    $region18: #{_matcher_cost_padded.1} parent=1 // pred_check
      _
    $region19: #{_matcher_cost_padded.1} parent=1 // pred_check_branch
      %468 = sbr.rel (0) target = $region21
    $region20: #{_matcher_cost_padded.1} parent=1 // pred_region
      %469 = dma.done [#allocation3], 256
    $region21: #{_matcher_cost_padded.1} parent=1 // pred_fallthru
      _
    %470 = vsyncpa [#allocation3], 1

</llo_original>
